<compile_context>
chip_gen: v5e
topology: v5e:2x2
jax: 0.10.0
libtpu: 0.0.40
codegen_flags: <defaults>
</compile_context>

<pallas_src>
import math

import jax
import jax.numpy as jnp
from jax.experimental import pallas as pl
from jax.experimental.pallas import tpu as pltpu


def _round_up(v, m):
    return ((v + m - 1) // m) * m


def tcn_kernel(x_ref, *refs):
    """One batch element per grid step: 3 causal dilated conv layers in VMEM.

    x_ref        : (1, Sp, Cp) f32   lane-padded (Sp seq rows, Cp channels)
    per layer i  : w_ref (2*Cp, Cp) bf16   rows [0:Cp]  = W[:, :, 0]^T (delayed)
                                           rows [Cp:]   = W[:, :, 1]^T (current)
                   b_ref (1, Cp)   f32    bias, lane-padded
    out_ref      : (1, Sp, Cp) bf16
    """
    out_ref = refs[-1]
    layer_refs = refs[:-1]
    num_layers = len(layer_refs) // 2

    # relu(pad(x)) == pad(relu(x)); pad zeros are realised by the roll mask.
    h = jnp.maximum(x_ref[0], 0.0)                       # (Sp, Cp) f32
    sp, cp = h.shape
    t = jax.lax.broadcasted_iota(jnp.int32, (sp, cp), 0)  # row index within seq

    for i in range(num_layers):
        w_ref, b_ref = layer_refs[2 * i], layer_refs[2 * i + 1]
        d = 2 ** i
        # delayed tap: h[t-d] for t >= d, zero otherwise (causal left-pad).
        rolled = pltpu.roll(h, shift=d, axis=0)          # XLU sublane rotate
        shifted = jnp.where(t >= d, rolled, 0.0)         # VPU mask
        # fused two-tap matmul: K = 2*Cp fills the 256-deep MXU on v6e/v7x.
        h_cat = jnp.concatenate([shifted, h], axis=-1).astype(jnp.bfloat16)
        y = jnp.dot(h_cat, w_ref[...], preferred_element_type=jnp.float32)
        h = jnp.maximum(y + b_ref[...], 0.0)
        # relu(pad(.)) between layers is a no-op: h >= 0 and the pad is zeros.

    out_ref[0] = h.astype(out_ref.dtype)


def tcn_forward(x, params, kernel_size=2):
    """x: (B, S, input_size) -> (B, S, hidden_size), matching PyTorch TCN."""
    assert kernel_size == 2, "kernel specialised to the module default kernel_size=2"
    weights, biases = params["weights"], params["biases"]
    num_layers = len(weights)
    B, S, c_in = x.shape
    hidden = weights[0].shape[0]

    lane = 128
    cp = _round_up(max(c_in, hidden), lane)   # lane-padded channel width
    sp = _round_up(S, 16)                     # sublane-aligned (bf16 tile) seq

    # lane/sublane padded input; padded rows/lanes are zero -> stay zero.
    xp = jnp.zeros((B, sp, cp), jnp.float32).at[:, :S, :c_in].set(
        x.astype(jnp.float32))

    args = [xp]
    in_specs = [pl.BlockSpec((1, sp, cp), lambda b: (b, 0, 0))]
    for i in range(num_layers):
        in_ch = c_in if i == 0 else hidden
        W = weights[i].astype(jnp.float32)                # (hidden, in_ch, 2)
        w_cat = jnp.zeros((2 * cp, cp), jnp.float32)
        w_cat = w_cat.at[:in_ch, :hidden].set(W[:, :, 0].T)           # delayed
        w_cat = w_cat.at[cp:cp + in_ch, :hidden].set(W[:, :, 1].T)    # current
        args.append(w_cat.astype(jnp.bfloat16))
        in_specs.append(pl.BlockSpec((2 * cp, cp), lambda b: (0, 0)))  # resident
        bvec = jnp.zeros((1, cp), jnp.float32).at[0, :hidden].set(
            biases[i].astype(jnp.float32))
        args.append(bvec)
        in_specs.append(pl.BlockSpec((1, cp), lambda b: (0, 0)))       # resident

    out = pl.pallas_call(
        tcn_kernel,
        out_shape=jax.ShapeDtypeStruct((B, sp, cp), jnp.bfloat16),
        grid=(B,),
        in_specs=in_specs,
        out_specs=pl.BlockSpec((1, sp, cp), lambda b: (b, 0, 0)),
        compiler_params=pltpu.CompilerParams(
            dimension_semantics=("parallel",)),
    )(*args)

    return out[:, :S, :hidden].astype(jnp.float32)


def tcn_reference(x, params, kernel_size=2, compute_dtype=jnp.float32):
    """Pure-JAX replica of the PyTorch TCN forward (pad->relu->conv->relu).

    compute_dtype quantises the matmul operands (to mirror the kernel's bf16
    MXU operands) while accumulating in f32.
    """
    h = jnp.transpose(x, (0, 2, 1)).astype(jnp.float32)          # (B, C, S)
    for i, (W, b) in enumerate(zip(params["weights"], params["biases"])):
        d = 2 ** i
        pad = (kernel_size - 1) * d
        h = jnp.pad(h, ((0, 0), (0, 0), (pad, 0)))               # ZeroPad2d((pad,0,0,0))
        h = jnp.maximum(h, 0.0)                                  # relu after pad layer
        s_out = h.shape[2] - pad
        hq = h.astype(compute_dtype).astype(jnp.float32)
        Wq = W.astype(compute_dtype).astype(jnp.float32)
        y = jnp.broadcast_to(b[None, :, None].astype(jnp.float32),
                             (h.shape[0], W.shape[0], s_out))
        for k in range(kernel_size):
            y = y + jnp.einsum("oc,bct->bot", Wq[:, :, k],
                               hq[:, :, k * d:k * d + s_out])
        h = jnp.maximum(y, 0.0)                                  # relu after conv layer
    return jnp.transpose(h, (0, 2, 1))                           # (B, S, H)


def init_params(key, input_size, hidden_size, num_layers=3, kernel_size=2):
    """Conv1d-style init: U(-1/sqrt(fan_in), 1/sqrt(fan_in))."""
    weights, biases = [], []
    for i in range(num_layers):
        in_ch = input_size if i == 0 else hidden_size
        key, kw, kb = jax.random.split(key, 3)
        bound = 1.0 / math.sqrt(in_ch * kernel_size)
        weights.append(jax.random.uniform(
            kw, (hidden_size, in_ch, kernel_size), jnp.float32, -bound, bound))
        biases.append(jax.random.uniform(
            kb, (hidden_size,), jnp.float32, -bound, bound))
    return {"weights": weights, "biases": biases}


if __name__ == "__main__":
    batch, seq_len = 2, 16
    input_size, hidden_size, num_layers, kernel_size = 8, 32, 3, 2

    root = jax.random.PRNGKey(0)
    kx, kp = jax.random.split(root)
    x = jax.random.normal(kx, (batch, seq_len, input_size), jnp.float32)
    params = init_params(kp, input_size, hidden_size, num_layers, kernel_size)

    out = jax.block_until_ready(tcn_forward(x, params, kernel_size))
    ref_bf16 = tcn_reference(x, params, kernel_size, jnp.bfloat16)  # same op precision
    ref_f32 = tcn_reference(x, params, kernel_size, jnp.float32)    # full-precision spec

    assert out.shape == (batch, seq_len, hidden_size), out.shape
    err16 = float(jnp.max(jnp.abs(out - ref_bf16)))
    err32 = float(jnp.max(jnp.abs(out - ref_f32)))
    assert jnp.allclose(out, ref_bf16, rtol=1e-2, atol=1e-2), err16
    assert jnp.allclose(out, ref_f32, rtol=5e-2, atol=5e-2), err32
    print("KERNEL_OK")
</pallas_src>

<mosaic_0001>
module attributes {stable_mosaic.version = 11 : i64} {
  func.func @tcn_kernel(%arg0: i32, %arg1: memref<1x16x128xf32, #tpu.memory_space<vmem>>, %arg2: memref<256x128xbf16, #tpu.memory_space<vmem>>, %arg3: memref<1x128xf32, #tpu.memory_space<vmem>>, %arg4: memref<256x128xbf16, #tpu.memory_space<vmem>>, %arg5: memref<1x128xf32, #tpu.memory_space<vmem>>, %arg6: memref<256x128xbf16, #tpu.memory_space<vmem>>, %arg7: memref<1x128xf32, #tpu.memory_space<vmem>>, %arg8: memref<1x16x128xbf16, #tpu.memory_space<vmem>>) attributes {dimension_semantics = [#tpu.dimension_semantics<parallel>], iteration_bounds = array<i64: 2>, scalar_prefetch = 0 : i64, scratch_operands = 0 : i64, tpu.core_type = #tpu.core_type<tc>, window_params = [{transform_indices = @transform_0, window_bounds = array<i64: 1, 16, 128>}, {pipeline_mode = #tpu.pipeline_mode<synchronous>, transform_indices = @transform_1, window_bounds = array<i64: 256, 128>}, {pipeline_mode = #tpu.pipeline_mode<synchronous>, transform_indices = @transform_2, window_bounds = array<i64: 1, 128>}, {pipeline_mode = #tpu.pipeline_mode<synchronous>, transform_indices = @transform_3, window_bounds = array<i64: 256, 128>}, {pipeline_mode = #tpu.pipeline_mode<synchronous>, transform_indices = @transform_4, window_bounds = array<i64: 1, 128>}, {pipeline_mode = #tpu.pipeline_mode<synchronous>, transform_indices = @transform_5, window_bounds = array<i64: 256, 128>}, {pipeline_mode = #tpu.pipeline_mode<synchronous>, transform_indices = @transform_6, window_bounds = array<i64: 1, 128>}, {transform_indices = @transform_7, window_bounds = array<i64: 1, 16, 128>}]} {
    %c0 = arith.constant 0 : index
    %c0_0 = arith.constant 0 : index
    %c0_1 = arith.constant 0 : index
    %0 = vector.load %arg1[%c0, %c0_0, %c0_1] : memref<1x16x128xf32, #tpu.memory_space<vmem>>, vector<1x16x128xf32>
    %1 = vector.shape_cast %0 : vector<1x16x128xf32> to vector<16x128xf32>
    %cst = arith.constant 0.000000e+00 : f32
    %2 = vector.broadcast %cst : f32 to vector<16x128xf32>
    %3 = arith.maximumf %1, %2 : vector<16x128xf32>
    %4 = tpu.iota {dimensions = array<i32: 0>} : vector<16x128xi32>
    %c1_i32 = arith.constant 1 : i32
    %5 = tpu.dynamic_rotate %3 by %c1_i32 dim 0 : vector<16x128xf32>, i32 -> vector<16x128xf32>
    %c1_i32_2 = arith.constant 1 : i32
    %6 = vector.broadcast %c1_i32_2 : i32 to vector<16x128xi32>
    %7 = arith.cmpi sge, %4, %6 : vector<16x128xi32>
    %cst_3 = arith.constant 0.000000e+00 : f32
    %8 = vector.broadcast %cst_3 : f32 to vector<16x128xf32>
    %9 = arith.select %7, %5, %8 : vector<16x128xi1>, vector<16x128xf32>
    %10 = tpu.concatenate %9, %3 in 1 : vector<16x128xf32>, vector<16x128xf32> -> vector<16x256xf32>
    %11 = arith.truncf %10 : vector<16x256xf32> to vector<16x256xbf16>
    %c0_4 = arith.constant 0 : index
    %c0_5 = arith.constant 0 : index
    %12 = vector.load %arg2[%c0_4, %c0_5] : memref<256x128xbf16, #tpu.memory_space<vmem>>, vector<256x128xbf16>
    %cst_6 = arith.constant dense<0.000000e+00> : vector<16x128xf32>
    %13 = tpu.matmul %11, %12, %cst_6 {dimension_numbers = #tpu.dot_dimension_numbers<[1], [0], [0], [1], [0, 0, 1, 1], [], []>} : vector<16x256xbf16>, vector<256x128xbf16>, vector<16x128xf32> -> vector<16x128xf32>
    %c0_7 = arith.constant 0 : index
    %c0_8 = arith.constant 0 : index
    %14 = vector.load %arg3[%c0_7, %c0_8] : memref<1x128xf32, #tpu.memory_space<vmem>>, vector<1x128xf32>
    %15 = vector.broadcast %14 : vector<1x128xf32> to vector<16x128xf32>
    %16 = arith.addf %13, %15 : vector<16x128xf32>
    %cst_9 = arith.constant 0.000000e+00 : f32
    %17 = vector.broadcast %cst_9 : f32 to vector<16x128xf32>
    %18 = arith.maximumf %16, %17 : vector<16x128xf32>
    %c2_i32 = arith.constant 2 : i32
    %19 = tpu.dynamic_rotate %18 by %c2_i32 dim 0 : vector<16x128xf32>, i32 -> vector<16x128xf32>
    %c2_i32_10 = arith.constant 2 : i32
    %20 = vector.broadcast %c2_i32_10 : i32 to vector<16x128xi32>
    %21 = arith.cmpi sge, %4, %20 : vector<16x128xi32>
    %cst_11 = arith.constant 0.000000e+00 : f32
    %22 = vector.broadcast %cst_11 : f32 to vector<16x128xf32>
    %23 = arith.select %21, %19, %22 : vector<16x128xi1>, vector<16x128xf32>
    %24 = tpu.concatenate %23, %18 in 1 : vector<16x128xf32>, vector<16x128xf32> -> vector<16x256xf32>
    %25 = arith.truncf %24 : vector<16x256xf32> to vector<16x256xbf16>
    %c0_12 = arith.constant 0 : index
    %c0_13 = arith.constant 0 : index
    %26 = vector.load %arg4[%c0_12, %c0_13] : memref<256x128xbf16, #tpu.memory_space<vmem>>, vector<256x128xbf16>
    %cst_14 = arith.constant dense<0.000000e+00> : vector<16x128xf32>
    %27 = tpu.matmul %25, %26, %cst_14 {dimension_numbers = #tpu.dot_dimension_numbers<[1], [0], [0], [1], [0, 0, 1, 1], [], []>} : vector<16x256xbf16>, vector<256x128xbf16>, vector<16x128xf32> -> vector<16x128xf32>
    %c0_15 = arith.constant 0 : index
    %c0_16 = arith.constant 0 : index
    %28 = vector.load %arg5[%c0_15, %c0_16] : memref<1x128xf32, #tpu.memory_space<vmem>>, vector<1x128xf32>
    %29 = vector.broadcast %28 : vector<1x128xf32> to vector<16x128xf32>
    %30 = arith.addf %27, %29 : vector<16x128xf32>
    %cst_17 = arith.constant 0.000000e+00 : f32
    %31 = vector.broadcast %cst_17 : f32 to vector<16x128xf32>
    %32 = arith.maximumf %30, %31 : vector<16x128xf32>
    %c4_i32 = arith.constant 4 : i32
    %33 = tpu.dynamic_rotate %32 by %c4_i32 dim 0 : vector<16x128xf32>, i32 -> vector<16x128xf32>
    %c4_i32_18 = arith.constant 4 : i32
    %34 = vector.broadcast %c4_i32_18 : i32 to vector<16x128xi32>
    %35 = arith.cmpi sge, %4, %34 : vector<16x128xi32>
    %cst_19 = arith.constant 0.000000e+00 : f32
    %36 = vector.broadcast %cst_19 : f32 to vector<16x128xf32>
    %37 = arith.select %35, %33, %36 : vector<16x128xi1>, vector<16x128xf32>
    %38 = tpu.concatenate %37, %32 in 1 : vector<16x128xf32>, vector<16x128xf32> -> vector<16x256xf32>
    %39 = arith.truncf %38 : vector<16x256xf32> to vector<16x256xbf16>
    %c0_20 = arith.constant 0 : index
    %c0_21 = arith.constant 0 : index
    %40 = vector.load %arg6[%c0_20, %c0_21] : memref<256x128xbf16, #tpu.memory_space<vmem>>, vector<256x128xbf16>
    %cst_22 = arith.constant dense<0.000000e+00> : vector<16x128xf32>
    %41 = tpu.matmul %39, %40, %cst_22 {dimension_numbers = #tpu.dot_dimension_numbers<[1], [0], [0], [1], [0, 0, 1, 1], [], []>} : vector<16x256xbf16>, vector<256x128xbf16>, vector<16x128xf32> -> vector<16x128xf32>
    %c0_23 = arith.constant 0 : index
    %c0_24 = arith.constant 0 : index
    %42 = vector.load %arg7[%c0_23, %c0_24] : memref<1x128xf32, #tpu.memory_space<vmem>>, vector<1x128xf32>
    %43 = vector.broadcast %42 : vector<1x128xf32> to vector<16x128xf32>
    %44 = arith.addf %41, %43 : vector<16x128xf32>
    %cst_25 = arith.constant 0.000000e+00 : f32
    %45 = vector.broadcast %cst_25 : f32 to vector<16x128xf32>
    %46 = arith.maximumf %44, %45 : vector<16x128xf32>
    %47 = arith.truncf %46 : vector<16x128xf32> to vector<16x128xbf16>
    %c0_26 = arith.constant 0 : index
    %c0_27 = arith.constant 0 : index
    %c0_28 = arith.constant 0 : index
    %48 = vector.load %arg8[%c0_26, %c0_27, %c0_28] : memref<1x16x128xbf16, #tpu.memory_space<vmem>>, vector<1x16x128xbf16>
    %49 = vector.shape_cast %48 : vector<1x16x128xbf16> to vector<16x128xbf16>
    %50 = vector.shape_cast %47 : vector<16x128xbf16> to vector<1x16x128xbf16>
    tpu.vector_store %arg8[%c0_26, %c0_27, %c0_28], %50 {strides = array<i32>} : memref<1x16x128xbf16, #tpu.memory_space<vmem>>, vector<1x16x128xbf16>,
    return
  }
  func.func @transform_0(%arg0: i32) -> (i32, i32, i32) {
    %c0_i32 = arith.constant 0 : i32
    %c0_i32_0 = arith.constant 0 : i32
    %c0_i32_1 = arith.constant 0 : i32
    return %arg0, %c0_i32, %c0_i32_0 : i32, i32, i32
  }
  func.func @transform_1(%arg0: i32) -> (i32, i32) {
    %c0_i32 = arith.constant 0 : i32
    %c0_i32_0 = arith.constant 0 : i32
    %c0_i32_1 = arith.constant 0 : i32
    return %c0_i32, %c0_i32_0 : i32, i32
  }
  func.func @transform_2(%arg0: i32) -> (i32, i32) {
    %c0_i32 = arith.constant 0 : i32
    %c0_i32_0 = arith.constant 0 : i32
    %c0_i32_1 = arith.constant 0 : i32
    return %c0_i32, %c0_i32_0 : i32, i32
  }
  func.func @transform_3(%arg0: i32) -> (i32, i32) {
    %c0_i32 = arith.constant 0 : i32
    %c0_i32_0 = arith.constant 0 : i32
    %c0_i32_1 = arith.constant 0 : i32
    return %c0_i32, %c0_i32_0 : i32, i32
  }
  func.func @transform_4(%arg0: i32) -> (i32, i32) {
    %c0_i32 = arith.constant 0 : i32
    %c0_i32_0 = arith.constant 0 : i32
    %c0_i32_1 = arith.constant 0 : i32
    return %c0_i32, %c0_i32_0 : i32, i32
  }
  func.func @transform_5(%arg0: i32) -> (i32, i32) {
    %c0_i32 = arith.constant 0 : i32
    %c0_i32_0 = arith.constant 0 : i32
    %c0_i32_1 = arith.constant 0 : i32
    return %c0_i32, %c0_i32_0 : i32, i32
  }
  func.func @transform_6(%arg0: i32) -> (i32, i32) {
    %c0_i32 = arith.constant 0 : i32
    %c0_i32_0 = arith.constant 0 : i32
    %c0_i32_1 = arith.constant 0 : i32
    return %c0_i32, %c0_i32_0 : i32, i32
  }
  func.func @transform_7(%arg0: i32) -> (i32, i32, i32) {
    %c0_i32 = arith.constant 0 : i32
    %c0_i32_0 = arith.constant 0 : i32
    %c0_i32_1 = arith.constant 0 : i32
    return %arg0, %c0_i32, %c0_i32_0 : i32, i32, i32
  }
}

</mosaic_0001>

<llo_original>
// kernel: tpu_custom_call.1
$region0: #{tpu_custom_call.1}
  #allocation0 [shape = 'u32[]', space=smem, size = 0x4, offset = 0x4, fixed_abs, tag = 'smem constant byte address 0x4 - core index']
  #allocation1 [shape = 'u32[72,128]{1,0:T(1,128)}', space=vmem, size = 0x9000, scoped, tag = 'internal scratch']
  %s0 = inlined_call_operand.hbm [shape: f32[2,16,128], index: 0, kind: input, shape index: {}]
  %s1 = inlined_call_operand.hbm [shape: bf16[256,128], index: 1, kind: input, shape index: {}]
  %s2 = inlined_call_operand.vmem [shape: f32[1,128], index: 2, kind: input, shape index: {}]
  %s3 = inlined_call_operand.hbm [shape: bf16[256,128], index: 3, kind: input, shape index: {}]
  %s4 = inlined_call_operand.vmem [shape: f32[1,128], index: 4, kind: input, shape index: {}]
  %s5 = inlined_call_operand.hbm [shape: bf16[256,128], index: 5, kind: input, shape index: {}]
  %s6 = inlined_call_operand.vmem [shape: f32[1,128], index: 6, kind: input, shape index: {}]
  %s7 = inlined_call_operand.hbm [shape: bf16[2,16,128], index: 7, kind: output, shape index: {}]
  %s8 = sld [smem:[#allocation0]]
  $region77: #{tpu_custom_call.1} parent=0
    _
  %s10 = ssub.s32 1, %s8
  %s11 = scalar_select 0, %s10, %s8
  $region1: #{tpu_custom_call.1} parent=0
    #allocation2 [shape = 'u8[16384]{0}', space=vmem, size = 0x4000, scoped, tag = 'input window, operand 0']
    #allocation3 [shape = 's32[2]{0}', space=sflag, size = 0x8, scoped, tag = 'scoped memory for tpu_custom_call.1']
    #allocation4 [shape = 's32[2]{0}', space=sflag, size = 0x8, scoped, tag = 'scoped memory for tpu_custom_call.1']
    #allocation5 [shape = 'u8[65536]{0}', space=vmem, size = 0x10000, scoped, tag = 'input window, operand 1, single buffered']
    #allocation6 [shape = 's32[1]{0}', space=sflag, size = 0x4, scoped, tag = 'scoped memory for tpu_custom_call.1']
    #allocation7 [shape = 'u8[65536]{0}', space=vmem, size = 0x10000, scoped, tag = 'input window, operand 3, single buffered']
    #allocation8 [shape = 'u8[65536]{0}', space=vmem, size = 0x10000, scoped, tag = 'input window, operand 5, single buffered']
    #allocation9 [shape = 's32[1]{0}', space=sflag, size = 0x4, scoped, tag = 'scoped memory for tpu_custom_call.1']
    #allocation10 [shape = 'u8[8192]{0}', space=vmem, size = 0x2000, scoped, tag = 'output window, operand 0']
    %12 = vsyncpa [#allocation3], 0
    %s13 = scalar_lea.sflag [#allocation3], 1
    %14 = vsyncpa %s13, 0
    %15 = vsyncpa [#allocation6], 0
    %16 = vsyncpa [#allocation9], 0
    %17 = vsyncpa [#allocation4], 0
    %s18 = scalar_lea.sflag [#allocation4], 1
    %19 = vsyncpa %s18, 0
    loop: start=0, step=1, limit=4
    $region2: #{tpu_custom_call.1} parent=1 // loop_pre_header
      _
    $region3: #{tpu_custom_call.1} parent=1 // loop_header
      %s21 = sphi 0, %s25
      %p22 = scmp.ge.s32.totalorder %s21, 4
      %s31 = sphi 0, %s33
      %s34 = sphi 0, %s31
      %s35 = sphi 0, %s34
      %s51 = sphi 0, %s35
      %s55 = sphi 0, %s55
      %s57 = sphi 0, %s55
      %s58 = sphi 0, %s57
      %s72 = sphi 0, %s58
      %s76 = sphi 0, %s76
      %s78 = sphi 0, %s76
      %s79 = sphi 0, %s78
      %s93 = sphi 0, %s79
      %s97 = sphi 0, %s97
      %s99 = sphi 0, %s97
      %s100 = sphi 0, %s99
      %s114 = sphi 0, %s100
      %s118 = sphi 0, %s118
      %s120 = sphi 0, %s118
      %s121 = sphi 0, %s120
      %s135 = sphi 0, %s121
      %s139 = sphi 0, %s139
      %s141 = sphi 0, %s139
      %s142 = sphi 0, %s141
      %s156 = sphi 0, %s142
      %s160 = sphi 0, %s160
      %s162 = sphi 0, %s160
      %s163 = sphi 0, %s162
      %s177 = sphi 0, %s163
      %s183 = sphi 0, %s185
      %s186 = sphi 0, %s183
      %s187 = sphi 0, %s186
      %s203 = sphi 0, %s187
    $region4: #{tpu_custom_call.1} parent=1 // loop_header_branch
      %24 = sbr.rel (%p22) target = $region8
    $region5: #{tpu_custom_call.1} parent=1 // loop_body
      %s26 = ssub.s32 %s21, 1
      %s27 = ssub.s32 %s21, 2
      %s28 = sadd.s32 %s21, 1
      %s29 = ssub.s32 %s21, %s28
      %p30 = scmp.eq.s32.totalorder %s29, 0
      %s32 = sadd.s32 %s31, 1
      %s33 = scalar_select %p30, %s31, %s32
      %p36 = pneg %p30
      %p37 = scmp.eq.s32.totalorder %s21, 1
      %p38 = por %p36, %p37
      %p39 = scmp.ne.s32.totalorder %s31, %s34
      %p40 = scmp.eq.s32.totalorder %s21, 0
      %p41 = por %p39, %p40
      %p42 = scmp.ne.s32.totalorder %s31, %s34
      %p43 = scmp.eq.s32.totalorder %s26, 1
      %p44 = por %p42, %p43
      %p45 = scmp.ne.s32.totalorder %s34, %s35
      %p46 = scmp.eq.s32.totalorder %s26, 0
      %p47 = por %p45, %p46
      %p48 = scmp.ne.s32.totalorder %s34, %s35
      %p49 = scmp.eq.s32.totalorder %s27, 1
      %p50 = por %p48, %p49
      %p52 = scmp.ne.s32.totalorder %s35, %s51
      %p53 = scmp.eq.s32.totalorder %s27, 0
      %p54 = por %p52, %p53
      %s56 = sadd.s32 %s55, 1
      %p59 = scmp.eq.s32.totalorder %s21, 1
      %p60 = scmp.ne.s32.totalorder %s55, %s57
      %p61 = scmp.eq.s32.totalorder %s21, 0
      %p62 = por %p60, %p61
      %p63 = scmp.ne.s32.totalorder %s55, %s57
      %p64 = scmp.eq.s32.totalorder %s26, 1
      %p65 = por %p63, %p64
      %p66 = scmp.ne.s32.totalorder %s57, %s58
      %p67 = scmp.eq.s32.totalorder %s26, 0
      %p68 = por %p66, %p67
      %p69 = scmp.ne.s32.totalorder %s57, %s58
      %p70 = scmp.eq.s32.totalorder %s27, 1
      %p71 = por %p69, %p70
      %p73 = scmp.ne.s32.totalorder %s58, %s72
      %p74 = scmp.eq.s32.totalorder %s27, 0
      %p75 = por %p73, %p74
      %s77 = sadd.s32 %s76, 1
      %p80 = scmp.eq.s32.totalorder %s21, 1
      %p81 = scmp.ne.s32.totalorder %s76, %s78
      %p82 = scmp.eq.s32.totalorder %s21, 0
      %p83 = por %p81, %p82
      %p84 = scmp.ne.s32.totalorder %s76, %s78
      %p85 = scmp.eq.s32.totalorder %s26, 1
      %p86 = por %p84, %p85
      %p87 = scmp.ne.s32.totalorder %s78, %s79
      %p88 = scmp.eq.s32.totalorder %s26, 0
      %p89 = por %p87, %p88
      %p90 = scmp.ne.s32.totalorder %s78, %s79
      %p91 = scmp.eq.s32.totalorder %s27, 1
      %p92 = por %p90, %p91
      %p94 = scmp.ne.s32.totalorder %s79, %s93
      %p95 = scmp.eq.s32.totalorder %s27, 0
      %p96 = por %p94, %p95
      %s98 = sadd.s32 %s97, 1
      %p101 = scmp.eq.s32.totalorder %s21, 1
      %p102 = scmp.ne.s32.totalorder %s97, %s99
      %p103 = scmp.eq.s32.totalorder %s21, 0
      %p104 = por %p102, %p103
      %p105 = scmp.ne.s32.totalorder %s97, %s99
      %p106 = scmp.eq.s32.totalorder %s26, 1
      %p107 = por %p105, %p106
      %p108 = scmp.ne.s32.totalorder %s99, %s100
      %p109 = scmp.eq.s32.totalorder %s26, 0
      %p110 = por %p108, %p109
      %p111 = scmp.ne.s32.totalorder %s99, %s100
      %p112 = scmp.eq.s32.totalorder %s27, 1
      %p113 = por %p111, %p112
      %p115 = scmp.ne.s32.totalorder %s100, %s114
      %p116 = scmp.eq.s32.totalorder %s27, 0
      %p117 = por %p115, %p116
      %s119 = sadd.s32 %s118, 1
      %p122 = scmp.eq.s32.totalorder %s21, 1
      %p123 = scmp.ne.s32.totalorder %s118, %s120
      %p124 = scmp.eq.s32.totalorder %s21, 0
      %p125 = por %p123, %p124
      %p126 = scmp.ne.s32.totalorder %s118, %s120
      %p127 = scmp.eq.s32.totalorder %s26, 1
      %p128 = por %p126, %p127
      %p129 = scmp.ne.s32.totalorder %s120, %s121
      %p130 = scmp.eq.s32.totalorder %s26, 0
      %p131 = por %p129, %p130
      %p132 = scmp.ne.s32.totalorder %s120, %s121
      %p133 = scmp.eq.s32.totalorder %s27, 1
      %p134 = por %p132, %p133
      %p136 = scmp.ne.s32.totalorder %s121, %s135
      %p137 = scmp.eq.s32.totalorder %s27, 0
      %p138 = por %p136, %p137
      %s140 = sadd.s32 %s139, 1
      %p143 = scmp.eq.s32.totalorder %s21, 1
      %p144 = scmp.ne.s32.totalorder %s139, %s141
      %p145 = scmp.eq.s32.totalorder %s21, 0
      %p146 = por %p144, %p145
      %p147 = scmp.ne.s32.totalorder %s139, %s141
      %p148 = scmp.eq.s32.totalorder %s26, 1
      %p149 = por %p147, %p148
      %p150 = scmp.ne.s32.totalorder %s141, %s142
      %p151 = scmp.eq.s32.totalorder %s26, 0
      %p152 = por %p150, %p151
      %p153 = scmp.ne.s32.totalorder %s141, %s142
      %p154 = scmp.eq.s32.totalorder %s27, 1
      %p155 = por %p153, %p154
      %p157 = scmp.ne.s32.totalorder %s142, %s156
      %p158 = scmp.eq.s32.totalorder %s27, 0
      %p159 = por %p157, %p158
      %s161 = sadd.s32 %s160, 1
      %p164 = scmp.eq.s32.totalorder %s21, 1
      %p165 = scmp.ne.s32.totalorder %s160, %s162
      %p166 = scmp.eq.s32.totalorder %s21, 0
      %p167 = por %p165, %p166
      %p168 = scmp.ne.s32.totalorder %s160, %s162
      %p169 = scmp.eq.s32.totalorder %s26, 1
      %p170 = por %p168, %p169
      %p171 = scmp.ne.s32.totalorder %s162, %s163
      %p172 = scmp.eq.s32.totalorder %s26, 0
      %p173 = por %p171, %p172
      %p174 = scmp.ne.s32.totalorder %s162, %s163
      %p175 = scmp.eq.s32.totalorder %s27, 1
      %p176 = por %p174, %p175
      %p178 = scmp.ne.s32.totalorder %s163, %s177
      %p179 = scmp.eq.s32.totalorder %s27, 0
      %p180 = por %p178, %p179
      %s181 = ssub.s32 %s21, %s28
      %p182 = scmp.eq.s32.totalorder %s181, 0
      %s184 = sadd.s32 %s183, 1
      %s185 = scalar_select %p182, %s183, %s184
      %p188 = pneg %p182
      %p189 = scmp.eq.s32.totalorder %s21, 1
      %p190 = por %p188, %p189
      %p191 = scmp.ne.s32.totalorder %s183, %s186
      %p192 = scmp.eq.s32.totalorder %s21, 0
      %p193 = por %p191, %p192
      %p194 = scmp.ne.s32.totalorder %s183, %s186
      %p195 = scmp.eq.s32.totalorder %s26, 1
      %p196 = por %p194, %p195
      %p197 = scmp.ne.s32.totalorder %s186, %s187
      %p198 = scmp.eq.s32.totalorder %s26, 0
      %p199 = por %p197, %p198
      %p200 = scmp.ne.s32.totalorder %s186, %s187
      %p201 = scmp.eq.s32.totalorder %s27, 1
      %p202 = por %p200, %p201
      %p204 = scmp.ne.s32.totalorder %s187, %s203
      %p205 = scmp.eq.s32.totalorder %s27, 0
      %p206 = por %p204, %p205
      %p207 = scmp.le.s32.totalorder 1, %s21
      %p208 = scmp.lt.s32.totalorder %s21, 3
      %p209 = pnand %p207, %p208
      %p210 = pneg %p209
      // Predicated region
      $region9: #{tpu_custom_call.1} parent=5 // pred_check
        _
      $region10: #{tpu_custom_call.1} parent=5 // pred_check_branch
        %212 = sbr.rel (%p209) target = $region12
      $region11: #{tpu_custom_call.1} parent=5 // pred_region
        %s213 = ssub.s32 %s21, 1
        // Predicated region
        $region13: #{tpu_custom_call.1} parent=11 // pred_check
          %p214 = pneg %p68
        $region14: #{tpu_custom_call.1} parent=11 // pred_check_branch
          %216 = sbr.rel (%p214) target = $region16
        $region15: #{tpu_custom_call.1} parent=11 // pred_region
          %218 = vsyncadd [#allocation6], 0
          %s219 = sshll.u32 %s1, 4
          %s220 = int_to_ptr.hbm [resolvable:$true] %s219
          %s221 = sshll.u32 [#allocation5], 4
          %s222 = int_to_ptr.vmem [resolvable:$true] %s221
          %227 = dma.hbm_to_vmem [thread:$0]  %s220, 2048, %s222, [#allocation6], 64, 64, 4
        $region16: #{tpu_custom_call.1} parent=11 // pred_fallthru
          _
        // Predicated region
        $region17: #{tpu_custom_call.1} parent=11 // pred_check
          %p228 = pneg %p89
        $region18: #{tpu_custom_call.1} parent=11 // pred_check_branch
          %230 = sbr.rel (%p228) target = $region20
        $region19: #{tpu_custom_call.1} parent=11 // pred_region
          _
        $region20: #{tpu_custom_call.1} parent=11 // pred_fallthru
          _
        // Predicated region
        $region21: #{tpu_custom_call.1} parent=11 // pred_check
          %p231 = pneg %p110
        $region22: #{tpu_custom_call.1} parent=11 // pred_check_branch
          %233 = sbr.rel (%p231) target = $region24
        $region23: #{tpu_custom_call.1} parent=11 // pred_region
          %235 = vsyncadd [#allocation6], 0
          %s236 = sshll.u32 %s3, 4
          %s237 = int_to_ptr.hbm [resolvable:$true] %s236
          %s238 = sshll.u32 [#allocation7], 4
          %s239 = int_to_ptr.vmem [resolvable:$true] %s238
          %244 = dma.hbm_to_vmem [thread:$0]  %s237, 2048, %s239, [#allocation6], 64, 64, 4
        $region24: #{tpu_custom_call.1} parent=11 // pred_fallthru
          _
        // Predicated region
        $region25: #{tpu_custom_call.1} parent=11 // pred_check
          %p245 = pneg %p131
        $region26: #{tpu_custom_call.1} parent=11 // pred_check_branch
          %247 = sbr.rel (%p245) target = $region28
        $region27: #{tpu_custom_call.1} parent=11 // pred_region
          _
        $region28: #{tpu_custom_call.1} parent=11 // pred_fallthru
          _
        // Predicated region
        $region29: #{tpu_custom_call.1} parent=11 // pred_check
          %p248 = pneg %p152
        $region30: #{tpu_custom_call.1} parent=11 // pred_check_branch
          %250 = sbr.rel (%p248) target = $region32
        $region31: #{tpu_custom_call.1} parent=11 // pred_region
          %252 = vsyncadd [#allocation9], 0
          %s253 = sshll.u32 %s5, 4
          %s254 = int_to_ptr.hbm [resolvable:$true] %s253
          %s255 = sshll.u32 [#allocation8], 4
          %s256 = int_to_ptr.vmem [resolvable:$true] %s255
          %261 = dma.hbm_to_vmem [thread:$0]  %s254, 2048, %s256, [#allocation9], 64, 64, 4
        $region32: #{tpu_custom_call.1} parent=11 // pred_fallthru
          _
        // Predicated region
        $region33: #{tpu_custom_call.1} parent=11 // pred_check
          %p262 = pneg %p173
        $region34: #{tpu_custom_call.1} parent=11 // pred_check_branch
          %264 = sbr.rel (%p262) target = $region36
        $region35: #{tpu_custom_call.1} parent=11 // pred_region
          _
        $region36: #{tpu_custom_call.1} parent=11 // pred_fallthru
          _
      $region12: #{tpu_custom_call.1} parent=5 // pred_fallthru
        _
      %p265 = scmp.lt.s32.totalorder %s21, 2
      // Predicated region
      $region37: #{tpu_custom_call.1} parent=5 // pred_check
        %p266 = pneg %p265
      $region38: #{tpu_custom_call.1} parent=5 // pred_check_branch
        %268 = sbr.rel (%p266) target = $region40
      $region39: #{tpu_custom_call.1} parent=5 // pred_region
        // Predicated region
        $region41: #{tpu_custom_call.1} parent=39 // pred_check
          %p269 = pneg %p41
        $region42: #{tpu_custom_call.1} parent=39 // pred_check_branch
          %271 = sbr.rel (%p269) target = $region44
        $region43: #{tpu_custom_call.1} parent=39 // pred_region
          %s272 = sand.u32 %s31, 1
          %s273 = scalar_lea.sflag [#allocation3], %s272
          %s274 = sand.u32 %s31, 1
          %s275 = smul.addr %s274, 16
          %s276 = scalar_lea.vmem [#allocation2], %s275
          %278 = vsyncadd %s273, 0
          %s279 = smul.addr %s21, 2
          %s280 = smul.addr %s279, 8
          %s281 = scalar_lea.hbm %s0, %s280
          %s282 = sshll.u32 %s281, 4
          %s283 = int_to_ptr.hbm [resolvable:$true] %s282
          %s284 = sshll.u32 %s276, 4
          %s285 = int_to_ptr.vmem [resolvable:$true] %s284
          %290 = dma.hbm_to_vmem [thread:$0]  %s283, 256, %s285, %s273, 128, 128, 8
        $region44: #{tpu_custom_call.1} parent=39 // pred_fallthru
          _
      $region40: #{tpu_custom_call.1} parent=5 // pred_fallthru
        _
      %p291 = scmp.le.s32.totalorder 1, %s21
      %p292 = scmp.lt.s32.totalorder %s21, 3
      %p293 = pnand %p291, %p292
      %p294 = pneg %p293
      // Predicated region
      $region45: #{tpu_custom_call.1} parent=5 // pred_check
        _
      $region46: #{tpu_custom_call.1} parent=5 // pred_check_branch
        %296 = sbr.rel (%p293) target = $region48
      $region47: #{tpu_custom_call.1} parent=5 // pred_region
        %s297 = ssub.s32 %s21, 1
        %s298 = sand.u32 %s34, 1
        %s299 = scalar_lea.sflag [#allocation3], %s298
        %s300 = sand.u32 %s34, 1
        %s301 = smul.addr %s300, 16
        %s302 = scalar_lea.vmem [#allocation2], %s301
        // Predicated region
        $region49: #{tpu_custom_call.1} parent=47 // pred_check
          %p303 = pneg %p47
        $region50: #{tpu_custom_call.1} parent=47 // pred_check_branch
          %305 = sbr.rel (%p303) target = $region52
        $region51: #{tpu_custom_call.1} parent=47 // pred_region
          %307 = dma.done %s299, 256
        $region52: #{tpu_custom_call.1} parent=47 // pred_fallthru
          _
        // Predicated region
        $region53: #{tpu_custom_call.1} parent=47 // pred_check
          %p308 = pneg %p68
        $region54: #{tpu_custom_call.1} parent=47 // pred_check_branch
          %310 = sbr.rel (%p308) target = $region56
        $region55: #{tpu_custom_call.1} parent=47 // pred_region
          %312 = dma.done [#allocation6], 2048
        $region56: #{tpu_custom_call.1} parent=47 // pred_fallthru
          _
        // Predicated region
        $region57: #{tpu_custom_call.1} parent=47 // pred_check
          %p313 = pneg %p110
        $region58: #{tpu_custom_call.1} parent=47 // pred_check_branch
          %315 = sbr.rel (%p313) target = $region60
        $region59: #{tpu_custom_call.1} parent=47 // pred_region
          %317 = dma.done [#allocation6], 2048
        $region60: #{tpu_custom_call.1} parent=47 // pred_fallthru
          _
        // Predicated region
        $region61: #{tpu_custom_call.1} parent=47 // pred_check
          %p318 = pneg %p152
        $region62: #{tpu_custom_call.1} parent=47 // pred_check_branch
          %320 = sbr.rel (%p318) target = $region64
        $region63: #{tpu_custom_call.1} parent=47 // pred_region
          %322 = dma.done [#allocation9], 2048
        $region64: #{tpu_custom_call.1} parent=47 // pred_fallthru
          _
        %s323 = sand.u32 %s34, 1
        %s324 = scalar_lea.sflag [#allocation3], %s323
        %s325 = sand.u32 %s34, 1
        %s326 = smul.addr %s325, 16
        %s327 = scalar_lea.vmem [#allocation2], %s326
        %p328 = pneg %p47
        %p329 = pneg %p44
        %p330 = pneg %p68
        %p331 = pneg %p65
        %p332 = pneg %p89
        %p333 = pneg %p86
        %p334 = pneg %p110
        %p335 = pneg %p107
        %p336 = pneg %p131
        %p337 = pneg %p128
        %p338 = pneg %p152
        %p339 = pneg %p149
        %p340 = pneg %p173
        %p341 = pneg %p170
        %p342 = pneg %p199
        %p343 = pneg %p196
        %s344 = sand.u32 %s186, 1
        %s345 = scalar_lea.sflag [#allocation4], %s344
        %s346 = sand.u32 %s186, 1
        %s347 = smul.addr %s346, 8
        %s348 = scalar_lea.vmem [#allocation10], %s347
        %v349 = vld [vmem:[%s302] sm:$0xff]
        %v350 = vld [vmem:[%s302 + $0x8] sm:$0xff]
        %v351 = vmax.f32 %v349, 0.0
        %v352 = vmax.f32 %v350, 0.0
        %v353 = vlaneseq
        %v354 = vshrl.u32 %v353, 7
        %v355 = vadd.s32 %v354, 8
        %v356 = vrot.slane %v351, 7
        %v357 = vrot.slane %v352, 7
        %vm358 = vcmp.lt.s32.totalorder %v354, 1
        %v359 = vsel %vm358, %v356, %v357
        %v360 = vsel %vm358, %v357, %v356
        %vm361 = vcmp.ge.s32.totalorder %v354, 1
        %vm362 = vcmp.ge.s32.totalorder %v355, 1
        %v363 = vsel %vm361, %v360, 0.0
        %v364 = vsel %vm362, %v359, 0.0
        %v365 = vpack.c.bf16 %v364, %v363
        %v366 = vpack.c.bf16 %v352, %v351
        %v367 = vld [vmem:[#allocation5] sm:$0xf]
        %v368 = vld [vmem:[#allocation5 + $0x4] sm:$0xf]
        %v369 = vld [vmem:[#allocation5 + $0x8] sm:$0xf]
        %v370 = vld [vmem:[#allocation5 + $0xc] sm:$0xf]
        %v371 = vld [vmem:[#allocation5 + $0x10] sm:$0xf]
        %v372 = vld [vmem:[#allocation5 + $0x14] sm:$0xf]
        %v373 = vld [vmem:[#allocation5 + $0x18] sm:$0xf]
        %v374 = vld [vmem:[#allocation5 + $0x1c] sm:$0xf]
        %v375 = vld [vmem:[#allocation5 + $0x20] sm:$0xf]
        %v376 = vld [vmem:[#allocation5 + $0x24] sm:$0xf]
        %v377 = vld [vmem:[#allocation5 + $0x28] sm:$0xf]
        %v378 = vld [vmem:[#allocation5 + $0x2c] sm:$0xf]
        %v379 = vld [vmem:[#allocation5 + $0x30] sm:$0xf]
        %v380 = vld [vmem:[#allocation5 + $0x34] sm:$0xf]
        %v381 = vld [vmem:[#allocation5 + $0x38] sm:$0xf]
        %v382 = vld [vmem:[#allocation5 + $0x3c] sm:$0xf]
        %v383 = vld [vmem:[#allocation5 + $0x40] sm:$0xf]
        %v384 = vld [vmem:[#allocation5 + $0x44] sm:$0xf]
        %v385 = vld [vmem:[#allocation5 + $0x48] sm:$0xf]
        %v386 = vld [vmem:[#allocation5 + $0x4c] sm:$0xf]
        %v387 = vld [vmem:[#allocation5 + $0x50] sm:$0xf]
        %v388 = vld [vmem:[#allocation5 + $0x54] sm:$0xf]
        %v389 = vld [vmem:[#allocation5 + $0x58] sm:$0xf]
        %v390 = vld [vmem:[#allocation5 + $0x5c] sm:$0xf]
        %v391 = vld [vmem:[#allocation5 + $0x60] sm:$0xf]
        %v392 = vld [vmem:[#allocation5 + $0x64] sm:$0xf]
        %v393 = vld [vmem:[#allocation5 + $0x68] sm:$0xf]
        %v394 = vld [vmem:[#allocation5 + $0x6c] sm:$0xf]
        %v395 = vld [vmem:[#allocation5 + $0x70] sm:$0xf]
        %v396 = vld [vmem:[#allocation5 + $0x74] sm:$0xf]
        %v397 = vld [vmem:[#allocation5 + $0x78] sm:$0xf]
        %v398 = vld [vmem:[#allocation5 + $0x7c] sm:$0xf]
        %v399 = vld [vmem:[%s2] sm:$0x1]
        %v401 = vperm.slane %v399, 0
        %v435 = vunpack.c.l.b16 %v367
        %v436 = vunpack.c.l.b16 %v368
        %v437 = vunpack.c.l.b16 %v369
        %v438 = vunpack.c.l.b16 %v370
        %v439 = vunpack.c.l.b16 %v371
        %v440 = vunpack.c.l.b16 %v372
        %v441 = vunpack.c.l.b16 %v373
        %v442 = vunpack.c.l.b16 %v374
        %v443 = vunpack.c.l.b16 %v375
        %v444 = vunpack.c.l.b16 %v376
        %v445 = vunpack.c.l.b16 %v377
        %v446 = vunpack.c.l.b16 %v378
        %v447 = vunpack.c.l.b16 %v379
        %v448 = vunpack.c.l.b16 %v380
        %v449 = vunpack.c.l.b16 %v381
        %v450 = vunpack.c.l.b16 %v382
        %v451 = vunpack.c.l.b16 %v383
        %v452 = vunpack.c.l.b16 %v384
        %v453 = vunpack.c.l.b16 %v385
        %v454 = vunpack.c.l.b16 %v386
        %v455 = vunpack.c.l.b16 %v387
        %v456 = vunpack.c.l.b16 %v388
        %v457 = vunpack.c.l.b16 %v389
        %v458 = vunpack.c.l.b16 %v390
        %v459 = vunpack.c.l.b16 %v391
        %v460 = vunpack.c.l.b16 %v392
        %v461 = vunpack.c.l.b16 %v393
        %v462 = vunpack.c.l.b16 %v394
        %v463 = vunpack.c.l.b16 %v395
        %v464 = vunpack.c.l.b16 %v396
        %v465 = vunpack.c.l.b16 %v397
        %v466 = vunpack.c.l.b16 %v398
        %v467 = vpack.c.b16 %v436, %v435
        %v468 = vpack.c.b16 %v438, %v437
        %v469 = vpack.c.b16 %v440, %v439
        %v470 = vpack.c.b16 %v442, %v441
        %v471 = vpack.c.b16 %v444, %v443
        %v472 = vpack.c.b16 %v446, %v445
        %v473 = vpack.c.b16 %v448, %v447
        %v474 = vpack.c.b16 %v450, %v449
        %v475 = vpack.c.b16 %v452, %v451
        %v476 = vpack.c.b16 %v454, %v453
        %v477 = vpack.c.b16 %v456, %v455
        %v478 = vpack.c.b16 %v458, %v457
        %v479 = vpack.c.b16 %v460, %v459
        %v480 = vpack.c.b16 %v462, %v461
        %v481 = vpack.c.b16 %v464, %v463
        %v482 = vpack.c.b16 %v466, %v465
        %499 = vmatpush.bf16.msra.mxu0 %v474
        %500 = vmatpush.bf16.msra.mxu0 %v473
        %501 = vmatpush.bf16.msra.mxu0 %v472
        %502 = vmatpush.bf16.msra.mxu0 %v471
        %503 = vmatpush.bf16.msra.mxu0 %v470
        %504 = vmatpush.bf16.msra.mxu0 %v469
        %505 = vmatpush.bf16.msra.mxu0 %v468
        %506 = vmatpush.bf16.msra.mxu0 %v467
        %507 = vmatmul.bf16.gmra.mxu0 %v365
        %v508 = vpop.f32.mrf.mxu0
        %v509 = vadd.f32 %v401, %v508
        %v510 = vpop.f32.mrf.mxu0
        %v511 = vadd.f32 %v401, %v510
        %512 = vdwg.mxu0
        %513 = vmatpush.bf16.msra.mxu0 %v482
        %514 = vmatpush.bf16.msra.mxu0 %v481
        %515 = vmatpush.bf16.msra.mxu0 %v480
        %516 = vmatpush.bf16.msra.mxu0 %v479
        %517 = vmatpush.bf16.msra.mxu0 %v478
        %518 = vmatpush.bf16.msra.mxu0 %v477
        %519 = vmatpush.bf16.msra.mxu0 %v476
        %520 = vmatpush.bf16.msra.mxu0 %v475
        %521 = vmatmul.bf16.gmra.mxu0 %v366
        %v522 = vpop.f32.mrf.mxu0
        %v523 = vadd.f32 %v509, %v522
        %v524 = vpop.f32.mrf.mxu0
        %v525 = vadd.f32 %v511, %v524
        %526 = vdwg.mxu0
        %v527 = vmax.f32 %v523, 0.0
        %v528 = vmax.f32 %v525, 0.0
        %v529 = vrot.slane %v527, 6
        %v530 = vrot.slane %v528, 6
        %vm531 = vcmp.lt.s32.totalorder %v354, 2
        %v532 = vsel %vm531, %v529, %v530
        %v533 = vsel %vm531, %v530, %v529
        %vm534 = vcmp.ge.s32.totalorder %v354, 2
        %vm535 = vcmp.ge.s32.totalorder %v355, 2
        %v536 = vsel %vm534, %v533, 0.0
        %v537 = vsel %vm535, %v532, 0.0
        %v538 = vpack.c.bf16 %v537, %v536
        %v539 = vpack.c.bf16 %v528, %v527
        %v540 = vld [vmem:[#allocation7] sm:$0xf]
        %v541 = vld [vmem:[#allocation7 + $0x4] sm:$0xf]
        %v542 = vld [vmem:[#allocation7 + $0x8] sm:$0xf]
        %v543 = vld [vmem:[#allocation7 + $0xc] sm:$0xf]
        %v544 = vld [vmem:[#allocation7 + $0x10] sm:$0xf]
        %v545 = vld [vmem:[#allocation7 + $0x14] sm:$0xf]
        %v546 = vld [vmem:[#allocation7 + $0x18] sm:$0xf]
        %v547 = vld [vmem:[#allocation7 + $0x1c] sm:$0xf]
        %v548 = vld [vmem:[#allocation7 + $0x20] sm:$0xf]
        %v549 = vld [vmem:[#allocation7 + $0x24] sm:$0xf]
        %v550 = vld [vmem:[#allocation7 + $0x28] sm:$0xf]
        %v551 = vld [vmem:[#allocation7 + $0x2c] sm:$0xf]
        %v552 = vld [vmem:[#allocation7 + $0x30] sm:$0xf]
        %v553 = vld [vmem:[#allocation7 + $0x34] sm:$0xf]
        %v554 = vld [vmem:[#allocation7 + $0x38] sm:$0xf]
        %v555 = vld [vmem:[#allocation7 + $0x3c] sm:$0xf]
        %v556 = vld [vmem:[#allocation7 + $0x40] sm:$0xf]
        %v557 = vld [vmem:[#allocation7 + $0x44] sm:$0xf]
        %v558 = vld [vmem:[#allocation7 + $0x48] sm:$0xf]
        %v559 = vld [vmem:[#allocation7 + $0x4c] sm:$0xf]
        %v560 = vld [vmem:[#allocation7 + $0x50] sm:$0xf]
        %v561 = vld [vmem:[#allocation7 + $0x54] sm:$0xf]
        %v562 = vld [vmem:[#allocation7 + $0x58] sm:$0xf]
        %v563 = vld [vmem:[#allocation7 + $0x5c] sm:$0xf]
        %v564 = vld [vmem:[#allocation7 + $0x60] sm:$0xf]
        %v565 = vld [vmem:[#allocation7 + $0x64] sm:$0xf]
        %v566 = vld [vmem:[#allocation7 + $0x68] sm:$0xf]
        %v567 = vld [vmem:[#allocation7 + $0x6c] sm:$0xf]
        %v568 = vld [vmem:[#allocation7 + $0x70] sm:$0xf]
        %v569 = vld [vmem:[#allocation7 + $0x74] sm:$0xf]
        %v570 = vld [vmem:[#allocation7 + $0x78] sm:$0xf]
        %v571 = vld [vmem:[#allocation7 + $0x7c] sm:$0xf]
        %v572 = vld [vmem:[%s4] sm:$0x1]
        %v574 = vperm.slane %v572, 0
        %v608 = vunpack.c.l.b16 %v540
        %v609 = vunpack.c.l.b16 %v541
        %v610 = vunpack.c.l.b16 %v542
        %v611 = vunpack.c.l.b16 %v543
        %v612 = vunpack.c.l.b16 %v544
        %v613 = vunpack.c.l.b16 %v545
        %v614 = vunpack.c.l.b16 %v546
        %v615 = vunpack.c.l.b16 %v547
        %v616 = vunpack.c.l.b16 %v548
        %v617 = vunpack.c.l.b16 %v549
        %v618 = vunpack.c.l.b16 %v550
        %v619 = vunpack.c.l.b16 %v551
        %v620 = vunpack.c.l.b16 %v552
        %v621 = vunpack.c.l.b16 %v553
        %v622 = vunpack.c.l.b16 %v554
        %v623 = vunpack.c.l.b16 %v555
        %v624 = vunpack.c.l.b16 %v556
        %v625 = vunpack.c.l.b16 %v557
        %v626 = vunpack.c.l.b16 %v558
        %v627 = vunpack.c.l.b16 %v559
        %v628 = vunpack.c.l.b16 %v560
        %v629 = vunpack.c.l.b16 %v561
        %v630 = vunpack.c.l.b16 %v562
        %v631 = vunpack.c.l.b16 %v563
        %v632 = vunpack.c.l.b16 %v564
        %v633 = vunpack.c.l.b16 %v565
        %v634 = vunpack.c.l.b16 %v566
        %v635 = vunpack.c.l.b16 %v567
        %v636 = vunpack.c.l.b16 %v568
        %v637 = vunpack.c.l.b16 %v569
        %v638 = vunpack.c.l.b16 %v570
        %v639 = vunpack.c.l.b16 %v571
        %v640 = vpack.c.b16 %v609, %v608
        %v641 = vpack.c.b16 %v611, %v610
        %v642 = vpack.c.b16 %v613, %v612
        %v643 = vpack.c.b16 %v615, %v614
        %v644 = vpack.c.b16 %v617, %v616
        %v645 = vpack.c.b16 %v619, %v618
        %v646 = vpack.c.b16 %v621, %v620
        %v647 = vpack.c.b16 %v623, %v622
        %v648 = vpack.c.b16 %v625, %v624
        %v649 = vpack.c.b16 %v627, %v626
        %v650 = vpack.c.b16 %v629, %v628
        %v651 = vpack.c.b16 %v631, %v630
        %v652 = vpack.c.b16 %v633, %v632
        %v653 = vpack.c.b16 %v635, %v634
        %v654 = vpack.c.b16 %v637, %v636
        %v655 = vpack.c.b16 %v639, %v638
        %672 = vmatpush.bf16.msra.mxu0 %v647
        %673 = vmatpush.bf16.msra.mxu0 %v646
        %674 = vmatpush.bf16.msra.mxu0 %v645
        %675 = vmatpush.bf16.msra.mxu0 %v644
        %676 = vmatpush.bf16.msra.mxu0 %v643
        %677 = vmatpush.bf16.msra.mxu0 %v642
        %678 = vmatpush.bf16.msra.mxu0 %v641
        %679 = vmatpush.bf16.msra.mxu0 %v640
        %680 = vmatmul.bf16.gmra.mxu0 %v538
        %v681 = vpop.f32.mrf.mxu0
        %v682 = vadd.f32 %v574, %v681
        %v683 = vpop.f32.mrf.mxu0
        %v684 = vadd.f32 %v574, %v683
        %685 = vdwg.mxu0
        %686 = vmatpush.bf16.msra.mxu0 %v655
        %687 = vmatpush.bf16.msra.mxu0 %v654
        %688 = vmatpush.bf16.msra.mxu0 %v653
        %689 = vmatpush.bf16.msra.mxu0 %v652
        %690 = vmatpush.bf16.msra.mxu0 %v651
        %691 = vmatpush.bf16.msra.mxu0 %v650
        %692 = vmatpush.bf16.msra.mxu0 %v649
        %693 = vmatpush.bf16.msra.mxu0 %v648
        %694 = vmatmul.bf16.gmra.mxu0 %v539
        %v695 = vpop.f32.mrf.mxu0
        %v696 = vadd.f32 %v682, %v695
        %v697 = vpop.f32.mrf.mxu0
        %v698 = vadd.f32 %v684, %v697
        %699 = vdwg.mxu0
        %v700 = vmax.f32 %v696, 0.0
        %v701 = vmax.f32 %v698, 0.0
        %v702 = vrot.slane %v700, 4
        %v703 = vrot.slane %v701, 4
        %vm704 = vcmp.lt.s32.totalorder %v354, 4
        %v705 = vsel %vm704, %v702, %v703
        %v706 = vsel %vm704, %v703, %v702
        %vm707 = vcmp.ge.s32.totalorder %v354, 4
        %vm708 = vcmp.ge.s32.totalorder %v355, 4
        %v709 = vsel %vm707, %v706, 0.0
        %v710 = vsel %vm708, %v705, 0.0
        %v711 = vpack.c.bf16 %v710, %v709
        %v712 = vpack.c.bf16 %v701, %v700
        %v713 = vld [vmem:[#allocation8] sm:$0xf]
        %v714 = vld [vmem:[#allocation8 + $0x4] sm:$0xf]
        %v715 = vld [vmem:[#allocation8 + $0x8] sm:$0xf]
        %v716 = vld [vmem:[#allocation8 + $0xc] sm:$0xf]
        %v717 = vld [vmem:[#allocation8 + $0x10] sm:$0xf]
        %v718 = vld [vmem:[#allocation8 + $0x14] sm:$0xf]
        %v719 = vld [vmem:[#allocation8 + $0x18] sm:$0xf]
        %v720 = vld [vmem:[#allocation8 + $0x1c] sm:$0xf]
        %v721 = vld [vmem:[#allocation8 + $0x20] sm:$0xf]
        %v722 = vld [vmem:[#allocation8 + $0x24] sm:$0xf]
        %v723 = vld [vmem:[#allocation8 + $0x28] sm:$0xf]
        %v724 = vld [vmem:[#allocation8 + $0x2c] sm:$0xf]
        %v725 = vld [vmem:[#allocation8 + $0x30] sm:$0xf]
        %v726 = vld [vmem:[#allocation8 + $0x34] sm:$0xf]
        %v727 = vld [vmem:[#allocation8 + $0x38] sm:$0xf]
        %v728 = vld [vmem:[#allocation8 + $0x3c] sm:$0xf]
        %v729 = vld [vmem:[#allocation8 + $0x40] sm:$0xf]
        %v730 = vld [vmem:[#allocation8 + $0x44] sm:$0xf]
        %v731 = vld [vmem:[#allocation8 + $0x48] sm:$0xf]
        %v732 = vld [vmem:[#allocation8 + $0x4c] sm:$0xf]
        %v733 = vld [vmem:[#allocation8 + $0x50] sm:$0xf]
        %v734 = vld [vmem:[#allocation8 + $0x54] sm:$0xf]
        %v735 = vld [vmem:[#allocation8 + $0x58] sm:$0xf]
        %v736 = vld [vmem:[#allocation8 + $0x5c] sm:$0xf]
        %v737 = vld [vmem:[#allocation8 + $0x60] sm:$0xf]
        %v738 = vld [vmem:[#allocation8 + $0x64] sm:$0xf]
        %v739 = vld [vmem:[#allocation8 + $0x68] sm:$0xf]
        %v740 = vld [vmem:[#allocation8 + $0x6c] sm:$0xf]
        %v741 = vld [vmem:[#allocation8 + $0x70] sm:$0xf]
        %v742 = vld [vmem:[#allocation8 + $0x74] sm:$0xf]
        %v743 = vld [vmem:[#allocation8 + $0x78] sm:$0xf]
        %v744 = vld [vmem:[#allocation8 + $0x7c] sm:$0xf]
        %v745 = vld [vmem:[%s6] sm:$0x1]
        %v747 = vperm.slane %v745, 0
        %v781 = vunpack.c.l.b16 %v713
        %v782 = vunpack.c.l.b16 %v714
        %v783 = vunpack.c.l.b16 %v715
        %v784 = vunpack.c.l.b16 %v716
        %v785 = vunpack.c.l.b16 %v717
        %v786 = vunpack.c.l.b16 %v718
        %v787 = vunpack.c.l.b16 %v719
        %v788 = vunpack.c.l.b16 %v720
        %v789 = vunpack.c.l.b16 %v721
        %v790 = vunpack.c.l.b16 %v722
        %v791 = vunpack.c.l.b16 %v723
        %v792 = vunpack.c.l.b16 %v724
        %v793 = vunpack.c.l.b16 %v725
        %v794 = vunpack.c.l.b16 %v726
        %v795 = vunpack.c.l.b16 %v727
        %v796 = vunpack.c.l.b16 %v728
        %v797 = vunpack.c.l.b16 %v729
        %v798 = vunpack.c.l.b16 %v730
        %v799 = vunpack.c.l.b16 %v731
        %v800 = vunpack.c.l.b16 %v732
        %v801 = vunpack.c.l.b16 %v733
        %v802 = vunpack.c.l.b16 %v734
        %v803 = vunpack.c.l.b16 %v735
        %v804 = vunpack.c.l.b16 %v736
        %v805 = vunpack.c.l.b16 %v737
        %v806 = vunpack.c.l.b16 %v738
        %v807 = vunpack.c.l.b16 %v739
        %v808 = vunpack.c.l.b16 %v740
        %v809 = vunpack.c.l.b16 %v741
        %v810 = vunpack.c.l.b16 %v742
        %v811 = vunpack.c.l.b16 %v743
        %v812 = vunpack.c.l.b16 %v744
        %v813 = vpack.c.b16 %v782, %v781
        %v814 = vpack.c.b16 %v784, %v783
        %v815 = vpack.c.b16 %v786, %v785
        %v816 = vpack.c.b16 %v788, %v787
        %v817 = vpack.c.b16 %v790, %v789
        %v818 = vpack.c.b16 %v792, %v791
        %v819 = vpack.c.b16 %v794, %v793
        %v820 = vpack.c.b16 %v796, %v795
        %v821 = vpack.c.b16 %v798, %v797
        %v822 = vpack.c.b16 %v800, %v799
        %v823 = vpack.c.b16 %v802, %v801
        %v824 = vpack.c.b16 %v804, %v803
        %v825 = vpack.c.b16 %v806, %v805
        %v826 = vpack.c.b16 %v808, %v807
        %v827 = vpack.c.b16 %v810, %v809
        %v828 = vpack.c.b16 %v812, %v811
        %845 = vmatpush.bf16.msra.mxu0 %v820
        %846 = vmatpush.bf16.msra.mxu0 %v819
        %847 = vmatpush.bf16.msra.mxu0 %v818
        %848 = vmatpush.bf16.msra.mxu0 %v817
        %849 = vmatpush.bf16.msra.mxu0 %v816
        %850 = vmatpush.bf16.msra.mxu0 %v815
        %851 = vmatpush.bf16.msra.mxu0 %v814
        %852 = vmatpush.bf16.msra.mxu0 %v813
        %853 = vmatmul.bf16.gmra.mxu0 %v711
        %v854 = vpop.f32.mrf.mxu0
        %v855 = vadd.f32 %v747, %v854
        %v856 = vpop.f32.mrf.mxu0
        %v857 = vadd.f32 %v747, %v856
        %858 = vdwg.mxu0
        %859 = vmatpush.bf16.msra.mxu0 %v828
        %860 = vmatpush.bf16.msra.mxu0 %v827
        %861 = vmatpush.bf16.msra.mxu0 %v826
        %862 = vmatpush.bf16.msra.mxu0 %v825
        %863 = vmatpush.bf16.msra.mxu0 %v824
        %864 = vmatpush.bf16.msra.mxu0 %v823
        %865 = vmatpush.bf16.msra.mxu0 %v822
        %866 = vmatpush.bf16.msra.mxu0 %v821
        %867 = vmatmul.bf16.gmra.mxu0 %v712
        %v868 = vpop.f32.mrf.mxu0
        %v869 = vadd.f32 %v855, %v868
        %v870 = vpop.f32.mrf.mxu0
        %v871 = vadd.f32 %v857, %v870
        %872 = vdwg.mxu0
        %v873 = vmax.f32 %v869, 0.0
        %v874 = vmax.f32 %v871, 0.0
        %v875 = vpack.c.bf16 %v873, %v873
        %v876 = vpack.c.bf16 %v874, %v874
        %877 = vst [vmem:[%s348] sm:$0xf] %v875
        %878 = vst [vmem:[%s348 + $0x4] sm:$0xf] %v876
        %s879 = sand.u32 %s186, 1
        %s880 = scalar_lea.sflag [#allocation4], %s879
        %s881 = sand.u32 %s186, 1
        %s882 = smul.addr %s881, 8
        %s883 = scalar_lea.vmem [#allocation10], %s882
        // Predicated region
        $region65: #{tpu_custom_call.1} parent=47 // pred_check
          %p884 = pneg %p196
        $region66: #{tpu_custom_call.1} parent=47 // pred_check_branch
          %886 = sbr.rel (%p884) target = $region68
        $region67: #{tpu_custom_call.1} parent=47 // pred_region
          %888 = vsyncadd %s880, 0
          %s889 = smul.addr %s26, 2
          %s890 = smul.addr %s889, 4
          %s891 = scalar_lea.hbm %s7, %s890
          %s892 = sshll.u32 %s883, 4
          %s893 = int_to_ptr.vmem [resolvable:$true] %s892
          %s894 = sshll.u32 %s891, 4
          %s895 = int_to_ptr.hbm [resolvable:$true] %s894
          %900 = dma.vmem_to_hbm [thread:$0]  %s893, 128, %s895, %s880, 64, 64, 4
        $region68: #{tpu_custom_call.1} parent=47 // pred_fallthru
          _
      $region48: #{tpu_custom_call.1} parent=5 // pred_fallthru
        _
      %p901 = scmp.le.s32.totalorder 2, %s21
      // Predicated region
      $region69: #{tpu_custom_call.1} parent=5 // pred_check
        %p902 = pneg %p901
      $region70: #{tpu_custom_call.1} parent=5 // pred_check_branch
        %904 = sbr.rel (%p902) target = $region72
      $region71: #{tpu_custom_call.1} parent=5 // pred_region
        %s905 = ssub.s32 %s21, 2
        // Predicated region
        $region73: #{tpu_custom_call.1} parent=71 // pred_check
          %p906 = pneg %p202
        $region74: #{tpu_custom_call.1} parent=71 // pred_check_branch
          %908 = sbr.rel (%p906) target = $region76
        $region75: #{tpu_custom_call.1} parent=71 // pred_region
          %s909 = sand.u32 %s187, 1
          %s910 = scalar_lea.sflag [#allocation4], %s909
          %s911 = sand.u32 %s187, 1
          %s912 = smul.addr %s911, 8
          %s913 = scalar_lea.vmem [#allocation10], %s912
          %915 = dma.done %s910, 128
        $region76: #{tpu_custom_call.1} parent=71 // pred_fallthru
          _
      $region72: #{tpu_custom_call.1} parent=5 // pred_fallthru
        _
    $region6: #{tpu_custom_call.1} parent=1 // loop_footer
      %s25 = sadd.s32 1, %s21
    $region7: #{tpu_custom_call.1} parent=1 // loop_footer_branch
      %20 = sbr.rel target = $region3
    $region8: #{tpu_custom_call.1} parent=1 // loop_exit
      _
    %916 = vsyncpa [#allocation3], 1
    %s917 = scalar_lea.sflag [#allocation3], 1
    %918 = vsyncpa %s917, 1
    %919 = vsyncpa [#allocation6], 1
    %920 = vsyncpa [#allocation9], 1
    %921 = vsyncpa [#allocation4], 1
    %s922 = scalar_lea.sflag [#allocation4], 1
    %923 = vsyncpa %s922, 1

</llo_original>
